<compile_context>
chip_gen: v5e
topology: v5e:2x2
jax: 0.10.0
libtpu: 0.0.40
codegen_flags: <defaults>
</compile_context>

<pallas_src>
import jax
import jax.numpy as jnp
from jax.experimental import pallas as pl
from jax.experimental.pallas import tpu as pltpu

DIMS = [9, 70, 50, 30, 15, 2]   # layer widths, matches the PyTorch module
PAD = 128                       # lane padding for hidden layers (do NOT raise)
MAX_TILE_B = 4096               # batch tile upper bound
USE_BF16_MATMUL = False         # bf16 matmul operands (f32 accumulate); loosens tol to ~1e-2


def _round_up(n, m):
    return ((n + m - 1) // m) * m


def _cdiv(a, b):
    return (a + b - 1) // b


def mlp_kernel(x_ref, w1_ref, wp_ref, b_ref, out_ref):
    # x_ref : (TILE_B, 9)        f32 or bf16
    # w1_ref: (9, 128)           fc1 weight, out-dim zero-padded 70->128
    # wp_ref: (4, 128, 128)      fc2..fc5 weights, zero-padded to 128x128
    # b_ref : (5, 1, 128)        all biases (f32), zero-padded to 128
    # out_ref: (TILE_B, 2)       f32
    wd = wp_ref.dtype
    h = x_ref[...].astype(wd)
    # Bias add + tanh stay in f32 (v5e VPU/EUP have no bf16); dots accumulate f32.
    h = jnp.tanh(jnp.dot(h, w1_ref[...], preferred_element_type=jnp.float32)
                 + b_ref[0])
    h = jnp.tanh(jnp.dot(h.astype(wd), wp_ref[0],
                         preferred_element_type=jnp.float32) + b_ref[1])
    h = jnp.tanh(jnp.dot(h.astype(wd), wp_ref[1],
                         preferred_element_type=jnp.float32) + b_ref[2])
    h = jnp.tanh(jnp.dot(h.astype(wd), wp_ref[2],
                         preferred_element_type=jnp.float32) + b_ref[3])
    h = jnp.dot(h.astype(wd), wp_ref[3],
                preferred_element_type=jnp.float32) + b_ref[4]
    # Padded lanes (cols >= 2) are exactly zero; store only the real columns.
    out_ref[...] = h[:, :out_ref.shape[-1]]


def pack_params(params, matmul_dtype=jnp.float32):
    """params: list of 5 (W[in,out], b[1,out]) pairs (PyTorch W transposed)."""
    w1 = jnp.zeros((DIMS[0], PAD), jnp.float32)
    w1 = w1.at[:, :DIMS[1]].set(params[0][0])
    wp = jnp.zeros((4, PAD, PAD), jnp.float32)
    bp = jnp.zeros((5, 1, PAD), jnp.float32)
    bp = bp.at[0, 0, :DIMS[1]].set(params[0][1].reshape(-1))
    for j in range(1, 5):
        w, b = params[j]
        wp = wp.at[j - 1, :DIMS[j], :DIMS[j + 1]].set(w)
        bp = bp.at[j, 0, :DIMS[j + 1]].set(b.reshape(-1))
    return w1.astype(matmul_dtype), wp.astype(matmul_dtype), bp


def net2_forward(x, packed):
    """x: [B, 9] float32; packed: output of pack_params."""
    w1, wp, bp = packed
    B = x.shape[0]

    # --- Tiling: minimal padding, even split for v7x's 2 TensorCores. -------
    num_tiles = _cdiv(B, MAX_TILE_B)
    if B >= 1024:
        # >=2 tiles and even count so the "parallel" axis load-balances across
        # both TCs on v7x; no effect on v5e/v6e (single TC, grid is a loop).
        num_tiles = max(2, num_tiles)
        if num_tiles % 2:
            num_tiles += 1
    tile_b = _round_up(_cdiv(B, num_tiles), 8)
    padded_b = num_tiles * tile_b
    if padded_b != B:
        x = jnp.pad(x, ((0, padded_b - B), (0, 0)))
    x = x.astype(w1.dtype)
    grid = (num_tiles,)

    # Cost estimate reflects the padded (128-lane) work the MXU/EUP really do.
    padded_dims = [DIMS[0]] + [PAD] * 4 + [PAD]
    flops = 2 * padded_b * sum(padded_dims[i] * padded_dims[i + 1]
                               for i in range(5))
    transcendentals = padded_b * 4 * PAD
    bytes_accessed = (padded_b * DIMS[0] * x.dtype.itemsize
                      + padded_b * DIMS[-1] * 4
                      + w1.size * w1.dtype.itemsize
                      + wp.size * wp.dtype.itemsize
                      + bp.size * 4)

    out = pl.pallas_call(
        mlp_kernel,
        out_shape=jax.ShapeDtypeStruct((padded_b, DIMS[-1]), jnp.float32),
        grid=grid,
        in_specs=[
            pl.BlockSpec((tile_b, DIMS[0]), lambda i: (i, 0)),   # x: tiled over batch
            pl.BlockSpec(w1.shape, lambda i: (0, 0)),            # weights stay VMEM-resident
            pl.BlockSpec(wp.shape, lambda i: (0, 0, 0)),
            pl.BlockSpec(bp.shape, lambda i: (0, 0, 0)),
        ],
        out_specs=pl.BlockSpec((tile_b, DIMS[-1]), lambda i: (i, 0)),
        compiler_params=pltpu.CompilerParams(
            dimension_semantics=("parallel",)),
        cost_estimate=pl.CostEstimate(
            flops=flops,
            transcendentals=transcendentals,
            bytes_accessed=bytes_accessed),
    )(x, w1, wp, bp)
    return out[:B]


def init_params(key):
    params = []
    for i in range(5):
        key, kw, kb = jax.random.split(key, 3)
        fan_in = DIMS[i]
        bound = 1.0 / jnp.sqrt(fan_in)
        w = jax.random.uniform(kw, (DIMS[i], DIMS[i + 1]), jnp.float32,
                               minval=-bound, maxval=bound)
        b = jax.random.uniform(kb, (1, DIMS[i + 1]), jnp.float32,
                               minval=-bound, maxval=bound)
        params.append((w, b))
    return params


def _reference(x, params):
    h = x
    for i, (w, b) in enumerate(params):
        h = h @ w + b
        if i < 4:
            h = jnp.tanh(h)
    return h


if __name__ == "__main__":
    key = jax.random.PRNGKey(0)
    key, kx1, kx2 = jax.random.split(key, 3)
    params = init_params(key)
    matmul_dtype = jnp.bfloat16 if USE_BF16_MATMUL else jnp.float32
    packed = pack_params(params, matmul_dtype)
    atol = 1e-2 if USE_BF16_MATMUL else 1e-5

    # Small batch (single tile, no padding beyond sublane alignment).
    B1 = 8
    x1 = jax.random.normal(kx1, (B1, 9), dtype=jnp.float32)
    out1 = net2_forward(x1, packed)
    jax.block_until_ready(out1)
    ref1 = _reference(x1, params)
    assert out1.shape == (B1, 2)
    assert jnp.allclose(out1, ref1, atol=atol, rtol=atol)

    # Larger ragged batch (exercises the even 2-tile split + tail padding).
    B2 = 1030
    x2 = jax.random.normal(kx2, (B2, 9), dtype=jnp.float32)
    out2 = net2_forward(x2, packed)
    jax.block_until_ready(out2)
    ref2 = _reference(x2, params)
    assert out2.shape == (B2, 2)
    assert jnp.allclose(out2, ref2, atol=atol, rtol=atol)

    print("KERNEL_OK")
</pallas_src>

<mosaic_0001>
module attributes {stable_mosaic.version = 11 : i64} {
  func.func @mlp_kernel(%arg0: i32, %arg1: memref<8x9xf32, #tpu.memory_space<vmem>>, %arg2: memref<9x128xf32, #tpu.memory_space<vmem>>, %arg3: memref<4x128x128xf32, #tpu.memory_space<vmem>>, %arg4: memref<5x1x128xf32, #tpu.memory_space<vmem>>, %arg5: memref<8x2xf32, #tpu.memory_space<vmem>>) attributes {dimension_semantics = [#tpu.dimension_semantics<parallel>], iteration_bounds = array<i64: 1>, scalar_prefetch = 0 : i64, scratch_operands = 0 : i64, tpu.core_type = #tpu.core_type<tc>, window_params = [{transform_indices = @transform_0, window_bounds = array<i64: 8, 9>}, {pipeline_mode = #tpu.pipeline_mode<synchronous>, transform_indices = @transform_1, window_bounds = array<i64: 9, 128>}, {pipeline_mode = #tpu.pipeline_mode<synchronous>, transform_indices = @transform_2, window_bounds = array<i64: 4, 128, 128>}, {pipeline_mode = #tpu.pipeline_mode<synchronous>, transform_indices = @transform_3, window_bounds = array<i64: 5, 1, 128>}, {transform_indices = @transform_4, window_bounds = array<i64: 8, 2>}]} {
    %c0 = arith.constant 0 : index
    %c0_0 = arith.constant 0 : index
    %0 = vector.load %arg1[%c0, %c0_0] : memref<8x9xf32, #tpu.memory_space<vmem>>, vector<8x9xf32>
    %c0_1 = arith.constant 0 : index
    %c0_2 = arith.constant 0 : index
    %1 = vector.load %arg2[%c0_1, %c0_2] : memref<9x128xf32, #tpu.memory_space<vmem>>, vector<9x128xf32>
    %cst = arith.constant dense<0.000000e+00> : vector<8x128xf32>
    %2 = tpu.matmul %0, %1, %cst {dimension_numbers = #tpu.dot_dimension_numbers<[1], [0], [0], [1], [0, 0, 1, 1], [], []>} : vector<8x9xf32>, vector<9x128xf32>, vector<8x128xf32> -> vector<8x128xf32>
    %c0_3 = arith.constant 0 : index
    %c0_4 = arith.constant 0 : index
    %c0_5 = arith.constant 0 : index
    %3 = vector.load %arg4[%c0_3, %c0_4, %c0_5] : memref<5x1x128xf32, #tpu.memory_space<vmem>>, vector<1x1x128xf32>
    %4 = vector.shape_cast %3 : vector<1x1x128xf32> to vector<1x128xf32>
    %5 = vector.broadcast %4 : vector<1x128xf32> to vector<8x128xf32>
    %6 = arith.addf %2, %5 : vector<8x128xf32>
    %7 = math.tanh %6 : vector<8x128xf32>
    %c0_6 = arith.constant 0 : index
    %c0_7 = arith.constant 0 : index
    %c0_8 = arith.constant 0 : index
    %8 = vector.load %arg3[%c0_6, %c0_7, %c0_8] : memref<4x128x128xf32, #tpu.memory_space<vmem>>, vector<1x128x128xf32>
    %9 = vector.shape_cast %8 : vector<1x128x128xf32> to vector<128x128xf32>
    %cst_9 = arith.constant dense<0.000000e+00> : vector<8x128xf32>
    %10 = tpu.matmul %7, %9, %cst_9 {dimension_numbers = #tpu.dot_dimension_numbers<[1], [0], [0], [1], [0, 0, 1, 1], [], []>} : vector<8x128xf32>, vector<128x128xf32>, vector<8x128xf32> -> vector<8x128xf32>
    %c1 = arith.constant 1 : index
    %c0_10 = arith.constant 0 : index
    %c0_11 = arith.constant 0 : index
    %11 = vector.load %arg4[%c1, %c0_10, %c0_11] : memref<5x1x128xf32, #tpu.memory_space<vmem>>, vector<1x1x128xf32>
    %12 = vector.shape_cast %11 : vector<1x1x128xf32> to vector<1x128xf32>
    %13 = vector.broadcast %12 : vector<1x128xf32> to vector<8x128xf32>
    %14 = arith.addf %10, %13 : vector<8x128xf32>
    %15 = math.tanh %14 : vector<8x128xf32>
    %c1_12 = arith.constant 1 : index
    %c0_13 = arith.constant 0 : index
    %c0_14 = arith.constant 0 : index
    %16 = vector.load %arg3[%c1_12, %c0_13, %c0_14] : memref<4x128x128xf32, #tpu.memory_space<vmem>>, vector<1x128x128xf32>
    %17 = vector.shape_cast %16 : vector<1x128x128xf32> to vector<128x128xf32>
    %cst_15 = arith.constant dense<0.000000e+00> : vector<8x128xf32>
    %18 = tpu.matmul %15, %17, %cst_15 {dimension_numbers = #tpu.dot_dimension_numbers<[1], [0], [0], [1], [0, 0, 1, 1], [], []>} : vector<8x128xf32>, vector<128x128xf32>, vector<8x128xf32> -> vector<8x128xf32>
    %c2 = arith.constant 2 : index
    %c0_16 = arith.constant 0 : index
    %c0_17 = arith.constant 0 : index
    %19 = vector.load %arg4[%c2, %c0_16, %c0_17] : memref<5x1x128xf32, #tpu.memory_space<vmem>>, vector<1x1x128xf32>
    %20 = vector.shape_cast %19 : vector<1x1x128xf32> to vector<1x128xf32>
    %21 = vector.broadcast %20 : vector<1x128xf32> to vector<8x128xf32>
    %22 = arith.addf %18, %21 : vector<8x128xf32>
    %23 = math.tanh %22 : vector<8x128xf32>
    %c2_18 = arith.constant 2 : index
    %c0_19 = arith.constant 0 : index
    %c0_20 = arith.constant 0 : index
    %24 = vector.load %arg3[%c2_18, %c0_19, %c0_20] : memref<4x128x128xf32, #tpu.memory_space<vmem>>, vector<1x128x128xf32>
    %25 = vector.shape_cast %24 : vector<1x128x128xf32> to vector<128x128xf32>
    %cst_21 = arith.constant dense<0.000000e+00> : vector<8x128xf32>
    %26 = tpu.matmul %23, %25, %cst_21 {dimension_numbers = #tpu.dot_dimension_numbers<[1], [0], [0], [1], [0, 0, 1, 1], [], []>} : vector<8x128xf32>, vector<128x128xf32>, vector<8x128xf32> -> vector<8x128xf32>
    %c3 = arith.constant 3 : index
    %c0_22 = arith.constant 0 : index
    %c0_23 = arith.constant 0 : index
    %27 = vector.load %arg4[%c3, %c0_22, %c0_23] : memref<5x1x128xf32, #tpu.memory_space<vmem>>, vector<1x1x128xf32>
    %28 = vector.shape_cast %27 : vector<1x1x128xf32> to vector<1x128xf32>
    %29 = vector.broadcast %28 : vector<1x128xf32> to vector<8x128xf32>
    %30 = arith.addf %26, %29 : vector<8x128xf32>
    %31 = math.tanh %30 : vector<8x128xf32>
    %c3_24 = arith.constant 3 : index
    %c0_25 = arith.constant 0 : index
    %c0_26 = arith.constant 0 : index
    %32 = vector.load %arg3[%c3_24, %c0_25, %c0_26] : memref<4x128x128xf32, #tpu.memory_space<vmem>>, vector<1x128x128xf32>
    %33 = vector.shape_cast %32 : vector<1x128x128xf32> to vector<128x128xf32>
    %cst_27 = arith.constant dense<0.000000e+00> : vector<8x128xf32>
    %34 = tpu.matmul %31, %33, %cst_27 {dimension_numbers = #tpu.dot_dimension_numbers<[1], [0], [0], [1], [0, 0, 1, 1], [], []>} : vector<8x128xf32>, vector<128x128xf32>, vector<8x128xf32> -> vector<8x128xf32>
    %c4 = arith.constant 4 : index
    %c0_28 = arith.constant 0 : index
    %c0_29 = arith.constant 0 : index
    %35 = vector.load %arg4[%c4, %c0_28, %c0_29] : memref<5x1x128xf32, #tpu.memory_space<vmem>>, vector<1x1x128xf32>
    %36 = vector.shape_cast %35 : vector<1x1x128xf32> to vector<1x128xf32>
    %37 = vector.broadcast %36 : vector<1x128xf32> to vector<8x128xf32>
    %38 = arith.addf %34, %37 : vector<8x128xf32>
    %39 = vector.extract_strided_slice %38 {offsets = [0, 0], sizes = [8, 2], strides = [1, 1]} : vector<8x128xf32> to vector<8x2xf32>
    %c0_30 = arith.constant 0 : index
    %c0_31 = arith.constant 0 : index
    %40 = vector.load %arg5[%c0_30, %c0_31] : memref<8x2xf32, #tpu.memory_space<vmem>>, vector<8x2xf32>
    tpu.vector_store %arg5[%c0_30, %c0_31], %39 {strides = array<i32>} : memref<8x2xf32, #tpu.memory_space<vmem>>, vector<8x2xf32>,
    return
  }
  func.func @transform_0(%arg0: i32) -> (i32, i32) {
    %c0_i32 = arith.constant 0 : i32
    %c0_i32_0 = arith.constant 0 : i32
    return %arg0, %c0_i32 : i32, i32
  }
  func.func @transform_1(%arg0: i32) -> (i32, i32) {
    %c0_i32 = arith.constant 0 : i32
    %c0_i32_0 = arith.constant 0 : i32
    %c0_i32_1 = arith.constant 0 : i32
    return %c0_i32, %c0_i32_0 : i32, i32
  }
  func.func @transform_2(%arg0: i32) -> (i32, i32, i32) {
    %c0_i32 = arith.constant 0 : i32
    %c0_i32_0 = arith.constant 0 : i32
    %c0_i32_1 = arith.constant 0 : i32
    %c0_i32_2 = arith.constant 0 : i32
    return %c0_i32, %c0_i32_0, %c0_i32_1 : i32, i32, i32
  }
  func.func @transform_3(%arg0: i32) -> (i32, i32, i32) {
    %c0_i32 = arith.constant 0 : i32
    %c0_i32_0 = arith.constant 0 : i32
    %c0_i32_1 = arith.constant 0 : i32
    %c0_i32_2 = arith.constant 0 : i32
    return %c0_i32, %c0_i32_0, %c0_i32_1 : i32, i32, i32
  }
  func.func @transform_4(%arg0: i32) -> (i32, i32) {
    %c0_i32 = arith.constant 0 : i32
    %c0_i32_0 = arith.constant 0 : i32
    return %arg0, %c0_i32 : i32, i32
  }
}

</mosaic_0001>

<llo_original>
// kernel: tpu_custom_call.1
$region0: #{tpu_custom_call.1}
  #allocation0 [shape = 'u32[]', space=smem, size = 0x4, offset = 0x4, fixed_abs, tag = 'smem constant byte address 0x4 - core index']
  #allocation1 [shape = 'u32[72,128]{1,0:T(1,128)}', space=vmem, size = 0x9000, scoped, tag = 'internal scratch']
  %s0 = inlined_call_operand.hbm [shape: f32[8,9], index: 0, kind: input, shape index: {}]
  %s1 = inlined_call_operand.hbm [shape: f32[9,128], index: 1, kind: input, shape index: {}]
  %s2 = inlined_call_operand.hbm [shape: f32[4,128,128], index: 2, kind: input, shape index: {}]
  %s3 = inlined_call_operand.hbm [shape: f32[5,1,128], index: 3, kind: input, shape index: {}]
  %s4 = inlined_call_operand.vmem [shape: f32[8,2], index: 4, kind: output, shape index: {}]
  %s5 = sld [smem:[#allocation0]]
  $region42: #{tpu_custom_call.1} parent=0
    _
  %s7 = ssub.s32 1, %s5
  %s8 = scalar_select 0, %s7, %s5
  $region1: #{tpu_custom_call.1} parent=0
    #allocation2 [shape = 'u8[4096]{0}', space=vmem, size = 0x1000, scoped, tag = 'input window, operand 0, single buffered']
    #allocation3 [shape = 's32[1]{0}', space=sflag, size = 0x4, scoped, tag = 'scoped memory for tpu_custom_call.1']
    #allocation4 [shape = 'u8[8192]{0}', space=vmem, size = 0x2000, scoped, tag = 'input window, operand 1, single buffered']
    #allocation5 [shape = 's32[1]{0}', space=sflag, size = 0x4, scoped, tag = 'scoped memory for tpu_custom_call.1']
    #allocation6 [shape = 'u8[262144]{0}', space=vmem, size = 0x40000, scoped, tag = 'input window, operand 2, single buffered']
    #allocation7 [shape = 'u8[2560]{0}', space=vmem, size = 0xc00, scoped, tag = 'input window, operand 3, single buffered']
    #allocation8 [shape = 's32[1]{0}', space=sflag, size = 0x4, scoped, tag = 'scoped memory for tpu_custom_call.1']
    %9 = vsyncpa [#allocation3], 0
    %10 = vsyncpa [#allocation5], 0
    %11 = vsyncpa [#allocation8], 0
    // Predicated region
    $region2: #{tpu_custom_call.1} parent=1 // pred_check
      _
    $region3: #{tpu_custom_call.1} parent=1 // pred_check_branch
      %13 = sbr.rel (0) target = $region5
    $region4: #{tpu_custom_call.1} parent=1 // pred_region
      %15 = vsyncadd [#allocation3], 0
      %s17 = sshll.u32 %s0, 4
      %s18 = int_to_ptr.hbm [resolvable:$true] %s17
      %s19 = sshll.u32 [#allocation2], 4
      %s20 = int_to_ptr.vmem [resolvable:$true] %s19
      %22 = dma.hbm_to_vmem [thread:$0]  %s18, 128, %s20, [#allocation3]
    $region5: #{tpu_custom_call.1} parent=1 // pred_fallthru
      _
    // Predicated region
    $region6: #{tpu_custom_call.1} parent=1 // pred_check
      _
    $region7: #{tpu_custom_call.1} parent=1 // pred_check_branch
      %24 = sbr.rel (0) target = $region9
    $region8: #{tpu_custom_call.1} parent=1 // pred_region
      %26 = vsyncadd [#allocation5], 0
      %s27 = sshll.u32 %s1, 4
      %s28 = int_to_ptr.hbm [resolvable:$true] %s27
      %s29 = sshll.u32 [#allocation4], 4
      %s30 = int_to_ptr.vmem [resolvable:$true] %s29
      %35 = dma.hbm_to_vmem [thread:$0]  %s28, 256, %s30, [#allocation5], 128, 128, 8
    $region9: #{tpu_custom_call.1} parent=1 // pred_fallthru
      _
    // Predicated region
    $region10: #{tpu_custom_call.1} parent=1 // pred_check
      _
    $region11: #{tpu_custom_call.1} parent=1 // pred_check_branch
      %37 = sbr.rel (0) target = $region13
    $region12: #{tpu_custom_call.1} parent=1 // pred_region
      %39 = vsyncadd [#allocation5], 0
      %s40 = sshll.u32 %s2, 4
      %s41 = int_to_ptr.hbm [resolvable:$true] %s40
      %s42 = sshll.u32 [#allocation6], 4
      %s43 = int_to_ptr.vmem [resolvable:$true] %s42
      %48 = dma.hbm_to_vmem [thread:$0]  %s41, 8192, %s43, [#allocation5], 128, 128, 8
    $region13: #{tpu_custom_call.1} parent=1 // pred_fallthru
      _
    // Predicated region
    $region14: #{tpu_custom_call.1} parent=1 // pred_check
      _
    $region15: #{tpu_custom_call.1} parent=1 // pred_check_branch
      %50 = sbr.rel (0) target = $region17
    $region16: #{tpu_custom_call.1} parent=1 // pred_region
      %52 = vsyncadd [#allocation8], 0
      %s53 = sshll.u32 %s3, 4
      %s54 = int_to_ptr.hbm [resolvable:$true] %s53
      %s55 = sshll.u32 [#allocation7], 4
      %s56 = int_to_ptr.vmem [resolvable:$true] %s55
      %61 = dma.hbm_to_vmem [thread:$0]  %s54, 80, %s56, [#allocation8], 16, 16, 1
    $region17: #{tpu_custom_call.1} parent=1 // pred_fallthru
      _
    // Predicated region
    $region18: #{tpu_custom_call.1} parent=1 // pred_check
      _
    $region19: #{tpu_custom_call.1} parent=1 // pred_check_branch
      %63 = sbr.rel (0) target = $region21
    $region20: #{tpu_custom_call.1} parent=1 // pred_region
      %65 = dma.done [#allocation3], 128
    $region21: #{tpu_custom_call.1} parent=1 // pred_fallthru
      _
    // Predicated region
    $region22: #{tpu_custom_call.1} parent=1 // pred_check
      _
    $region23: #{tpu_custom_call.1} parent=1 // pred_check_branch
      %67 = sbr.rel (0) target = $region25
    $region24: #{tpu_custom_call.1} parent=1 // pred_region
      %69 = dma.done [#allocation5], 256
    $region25: #{tpu_custom_call.1} parent=1 // pred_fallthru
      _
    // Predicated region
    $region26: #{tpu_custom_call.1} parent=1 // pred_check
      _
    $region27: #{tpu_custom_call.1} parent=1 // pred_check_branch
      %71 = sbr.rel (0) target = $region29
    $region28: #{tpu_custom_call.1} parent=1 // pred_region
      %73 = dma.done [#allocation5], 8192
    $region29: #{tpu_custom_call.1} parent=1 // pred_fallthru
      _
    // Predicated region
    $region30: #{tpu_custom_call.1} parent=1 // pred_check
      _
    $region31: #{tpu_custom_call.1} parent=1 // pred_check_branch
      %75 = sbr.rel (0) target = $region33
    $region32: #{tpu_custom_call.1} parent=1 // pred_region
      %77 = dma.done [#allocation8], 80
    $region33: #{tpu_custom_call.1} parent=1 // pred_fallthru
      _
    %v78 = vld [vmem:[#allocation2] sm:$0xff]
    %v79 = vld [vmem:[#allocation4] sm:$0xff]
    %v80 = vld [vmem:[#allocation4 + $0x8] sm:$0x1]
    %v81 = vld [vmem:[#allocation7] sm:$0x1]
    %v83 = vperm.slane %v81, 0
    %vm85 = vcmask 72704
    %v87 = vsel %vm85, %v78, 0
    %vm89 = vcmask 1040384
    %v91 = vsel %vm89, %v80, 0
    %93 = vmatpush.msra.mxu0 0.0
    %94 = vmatpush.msra.mxu0 0.0
    %95 = vmatpush.msra.mxu0 0.0
    %96 = vmatpush.msra.mxu0 0.0
    %97 = vmatpush.msra.mxu0 0.0
    %98 = vmatpush.msra.mxu0 0.0
    %99 = vmatpush.msra.mxu0 0.0
    %100 = vmatpush.msra.mxu0 0.0
    %101 = vmatpush.msra.mxu0 0.0
    %102 = vmatpush.msra.mxu0 0.0
    %103 = vmatpush.msra.mxu0 0.0
    %104 = vmatpush.msra.mxu0 0.0
    %105 = vmatpush.msra.mxu0 0.0
    %106 = vmatpush.msra.mxu0 0.0
    %107 = vmatpush.msra.mxu0 %v91
    %108 = vmatpush.msra.mxu0 %v79
    %109 = vmatmul.f32.gmra.mxu0 %v87
    %v110 = vpop.f32.mrf.mxu0
    %v111 = vadd.f32 %v83, %v110
    %112 = vdwg.mxu0
    %v113 = vtanh.pop %v111
    %v114 = vld [vmem:[#allocation6] sm:$0xff]
    %v115 = vld [vmem:[#allocation6 + $0x8] sm:$0xff]
    %v116 = vld [vmem:[#allocation6 + $0x10] sm:$0xff]
    %v117 = vld [vmem:[#allocation6 + $0x18] sm:$0xff]
    %v118 = vld [vmem:[#allocation6 + $0x20] sm:$0xff]
    %v119 = vld [vmem:[#allocation6 + $0x28] sm:$0xff]
    %v120 = vld [vmem:[#allocation6 + $0x30] sm:$0xff]
    %v121 = vld [vmem:[#allocation6 + $0x38] sm:$0xff]
    %v122 = vld [vmem:[#allocation6 + $0x40] sm:$0xff]
    %v123 = vld [vmem:[#allocation6 + $0x48] sm:$0xff]
    %v124 = vld [vmem:[#allocation6 + $0x50] sm:$0xff]
    %v125 = vld [vmem:[#allocation6 + $0x58] sm:$0xff]
    %v126 = vld [vmem:[#allocation6 + $0x60] sm:$0xff]
    %v127 = vld [vmem:[#allocation6 + $0x68] sm:$0xff]
    %v128 = vld [vmem:[#allocation6 + $0x70] sm:$0xff]
    %v129 = vld [vmem:[#allocation6 + $0x78] sm:$0xff]
    %s130 = scalar_lea.vmem [#allocation7], 1
    %v131 = vld [vmem:[%s130] sm:$0x1]
    %v133 = vperm.slane %v131, 0
    %135 = vmatpush.msra.mxu0 %v129
    %136 = vmatpush.msra.mxu0 %v128
    %137 = vmatpush.msra.mxu0 %v127
    %138 = vmatpush.msra.mxu0 %v126
    %139 = vmatpush.msra.mxu0 %v125
    %140 = vmatpush.msra.mxu0 %v124
    %141 = vmatpush.msra.mxu0 %v123
    %142 = vmatpush.msra.mxu0 %v122
    %143 = vmatpush.msra.mxu0 %v121
    %144 = vmatpush.msra.mxu0 %v120
    %145 = vmatpush.msra.mxu0 %v119
    %146 = vmatpush.msra.mxu0 %v118
    %147 = vmatpush.msra.mxu0 %v117
    %148 = vmatpush.msra.mxu0 %v116
    %149 = vmatpush.msra.mxu0 %v115
    %150 = vmatpush.msra.mxu0 %v114
    %151 = vmatmul.f32.gmra.mxu0 %v113
    %v152 = vpop.f32.mrf.mxu0
    %v153 = vadd.f32 %v133, %v152
    %154 = vdwg.mxu0
    %v155 = vtanh.pop %v153
    %s156 = scalar_lea.vmem [#allocation6], 128
    %v157 = vld [vmem:[%s156] sm:$0xff]
    %v158 = vld [vmem:[%s156 + $0x8] sm:$0xff]
    %v159 = vld [vmem:[%s156 + $0x10] sm:$0xff]
    %v160 = vld [vmem:[%s156 + $0x18] sm:$0xff]
    %v161 = vld [vmem:[%s156 + $0x20] sm:$0xff]
    %v162 = vld [vmem:[%s156 + $0x28] sm:$0xff]
    %v163 = vld [vmem:[%s156 + $0x30] sm:$0xff]
    %v164 = vld [vmem:[%s156 + $0x38] sm:$0xff]
    %v165 = vld [vmem:[%s156 + $0x40] sm:$0xff]
    %v166 = vld [vmem:[%s156 + $0x48] sm:$0xff]
    %v167 = vld [vmem:[%s156 + $0x50] sm:$0xff]
    %v168 = vld [vmem:[%s156 + $0x58] sm:$0xff]
    %v169 = vld [vmem:[%s156 + $0x60] sm:$0xff]
    %v170 = vld [vmem:[%s156 + $0x68] sm:$0xff]
    %v171 = vld [vmem:[%s156 + $0x70] sm:$0xff]
    %v172 = vld [vmem:[%s156 + $0x78] sm:$0xff]
    %s173 = scalar_lea.vmem [#allocation7], 2
    %v174 = vld [vmem:[%s173] sm:$0x1]
    %v176 = vperm.slane %v174, 0
    %178 = vmatpush.msra.mxu0 %v172
    %179 = vmatpush.msra.mxu0 %v171
    %180 = vmatpush.msra.mxu0 %v170
    %181 = vmatpush.msra.mxu0 %v169
    %182 = vmatpush.msra.mxu0 %v168
    %183 = vmatpush.msra.mxu0 %v167
    %184 = vmatpush.msra.mxu0 %v166
    %185 = vmatpush.msra.mxu0 %v165
    %186 = vmatpush.msra.mxu0 %v164
    %187 = vmatpush.msra.mxu0 %v163
    %188 = vmatpush.msra.mxu0 %v162
    %189 = vmatpush.msra.mxu0 %v161
    %190 = vmatpush.msra.mxu0 %v160
    %191 = vmatpush.msra.mxu0 %v159
    %192 = vmatpush.msra.mxu0 %v158
    %193 = vmatpush.msra.mxu0 %v157
    %194 = vmatmul.f32.gmra.mxu0 %v155
    %v195 = vpop.f32.mrf.mxu0
    %v196 = vadd.f32 %v176, %v195
    %197 = vdwg.mxu0
    %v198 = vtanh.pop %v196
    %s199 = scalar_lea.vmem [#allocation6], 256
    %v200 = vld [vmem:[%s199] sm:$0xff]
    %v201 = vld [vmem:[%s199 + $0x8] sm:$0xff]
    %v202 = vld [vmem:[%s199 + $0x10] sm:$0xff]
    %v203 = vld [vmem:[%s199 + $0x18] sm:$0xff]
    %v204 = vld [vmem:[%s199 + $0x20] sm:$0xff]
    %v205 = vld [vmem:[%s199 + $0x28] sm:$0xff]
    %v206 = vld [vmem:[%s199 + $0x30] sm:$0xff]
    %v207 = vld [vmem:[%s199 + $0x38] sm:$0xff]
    %v208 = vld [vmem:[%s199 + $0x40] sm:$0xff]
    %v209 = vld [vmem:[%s199 + $0x48] sm:$0xff]
    %v210 = vld [vmem:[%s199 + $0x50] sm:$0xff]
    %v211 = vld [vmem:[%s199 + $0x58] sm:$0xff]
    %v212 = vld [vmem:[%s199 + $0x60] sm:$0xff]
    %v213 = vld [vmem:[%s199 + $0x68] sm:$0xff]
    %v214 = vld [vmem:[%s199 + $0x70] sm:$0xff]
    %v215 = vld [vmem:[%s199 + $0x78] sm:$0xff]
    %s216 = scalar_lea.vmem [#allocation7], 3
    %v217 = vld [vmem:[%s216] sm:$0x1]
    %v219 = vperm.slane %v217, 0
    %221 = vmatpush.msra.mxu0 %v215
    %222 = vmatpush.msra.mxu0 %v214
    %223 = vmatpush.msra.mxu0 %v213
    %224 = vmatpush.msra.mxu0 %v212
    %225 = vmatpush.msra.mxu0 %v211
    %226 = vmatpush.msra.mxu0 %v210
    %227 = vmatpush.msra.mxu0 %v209
    %228 = vmatpush.msra.mxu0 %v208
    %229 = vmatpush.msra.mxu0 %v207
    %230 = vmatpush.msra.mxu0 %v206
    %231 = vmatpush.msra.mxu0 %v205
    %232 = vmatpush.msra.mxu0 %v204
    %233 = vmatpush.msra.mxu0 %v203
    %234 = vmatpush.msra.mxu0 %v202
    %235 = vmatpush.msra.mxu0 %v201
    %236 = vmatpush.msra.mxu0 %v200
    %237 = vmatmul.f32.gmra.mxu0 %v198
    %v238 = vpop.f32.mrf.mxu0
    %v239 = vadd.f32 %v219, %v238
    %240 = vdwg.mxu0
    %v241 = vtanh.pop %v239
    %s242 = scalar_lea.vmem [#allocation6], 384
    %v243 = vld [vmem:[%s242] sm:$0xff]
    %v244 = vld [vmem:[%s242 + $0x8] sm:$0xff]
    %v245 = vld [vmem:[%s242 + $0x10] sm:$0xff]
    %v246 = vld [vmem:[%s242 + $0x18] sm:$0xff]
    %v247 = vld [vmem:[%s242 + $0x20] sm:$0xff]
    %v248 = vld [vmem:[%s242 + $0x28] sm:$0xff]
    %v249 = vld [vmem:[%s242 + $0x30] sm:$0xff]
    %v250 = vld [vmem:[%s242 + $0x38] sm:$0xff]
    %v251 = vld [vmem:[%s242 + $0x40] sm:$0xff]
    %v252 = vld [vmem:[%s242 + $0x48] sm:$0xff]
    %v253 = vld [vmem:[%s242 + $0x50] sm:$0xff]
    %v254 = vld [vmem:[%s242 + $0x58] sm:$0xff]
    %v255 = vld [vmem:[%s242 + $0x60] sm:$0xff]
    %v256 = vld [vmem:[%s242 + $0x68] sm:$0xff]
    %v257 = vld [vmem:[%s242 + $0x70] sm:$0xff]
    %v258 = vld [vmem:[%s242 + $0x78] sm:$0xff]
    %s259 = scalar_lea.vmem [#allocation7], 4
    %v260 = vld [vmem:[%s259] sm:$0x1]
    %v262 = vperm.slane %v260, 0
    %264 = vmatpush.msra.mxu0 %v258
    %265 = vmatpush.msra.mxu0 %v257
    %266 = vmatpush.msra.mxu0 %v256
    %267 = vmatpush.msra.mxu0 %v255
    %268 = vmatpush.msra.mxu0 %v254
    %269 = vmatpush.msra.mxu0 %v253
    %270 = vmatpush.msra.mxu0 %v252
    %271 = vmatpush.msra.mxu0 %v251
    %272 = vmatpush.msra.mxu0 %v250
    %273 = vmatpush.msra.mxu0 %v249
    %274 = vmatpush.msra.mxu0 %v248
    %275 = vmatpush.msra.mxu0 %v247
    %276 = vmatpush.msra.mxu0 %v246
    %277 = vmatpush.msra.mxu0 %v245
    %278 = vmatpush.msra.mxu0 %v244
    %279 = vmatpush.msra.mxu0 %v243
    %280 = vmatmul.f32.gmra.mxu0 %v241
    %v281 = vpop.f32.mrf.mxu0
    %v282 = vadd.f32 %v262, %v281
    %283 = vdwg.mxu0
    %vm284 = vcmask 15360
    %285 = vst.msk [vmem:[%s4] sm:$0xff] %vm284, %v282
    // Predicated region
    $region34: #{tpu_custom_call.1} parent=1 // pred_check
      _
    $region35: #{tpu_custom_call.1} parent=1 // pred_check_branch
      %287 = sbr.rel (0) target = $region37
    $region36: #{tpu_custom_call.1} parent=1 // pred_region
      _
    $region37: #{tpu_custom_call.1} parent=1 // pred_fallthru
      _
    // Predicated region
    $region38: #{tpu_custom_call.1} parent=1 // pred_check
      _
    $region39: #{tpu_custom_call.1} parent=1 // pred_check_branch
      %289 = sbr.rel (0) target = $region41
    $region40: #{tpu_custom_call.1} parent=1 // pred_region
      _
    $region41: #{tpu_custom_call.1} parent=1 // pred_fallthru
      _
    %290 = vsyncpa [#allocation3], 1
    %291 = vsyncpa [#allocation5], 1
    %292 = vsyncpa [#allocation8], 1

</llo_original>
